<compile_context>
chip_gen: v7x
topology: tpu7x:2x2x1
jax: 0.10.0
libtpu: 0.0.40
codegen_flags: <defaults>
</compile_context>

<pallas_src>
import functools
import math

import jax
import jax.numpy as jnp
from jax import lax
from jax.experimental import pallas as pl
from jax.experimental.pallas import tpu as pltpu

_EPS = 1e-5   # nn.BatchNorm2d default


# --------------------------------------------------------------------------- #
# Hardware-derived budgets
# --------------------------------------------------------------------------- #
def _round_up(x, m):
    return (x + m - 1) // m * m


def _physical_vmem_bytes():
    try:
        info = pltpu.get_tpu_info()
        v = getattr(info, "vmem_capacity_bytes", None)
        if v:
            return int(v)
    except Exception:
        pass
    try:
        kind = jax.devices()[0].device_kind.lower()
        if "v7" in kind:
            return 64 * 1024 * 1024
        return 128 * 1024 * 1024
    except Exception:
        return 64 * 1024 * 1024          # conservative (v7x per-core)


def _budgets():
    phys = _physical_vmem_bytes()
    vmem_limit = (phys * 3) // 4                           # ~96 MiB (128 phys), ~48 MiB (64 phys)
    tile_budget = min(12 * 1024 * 1024, vmem_limit // 10)  # ~9.6 MiB / ~4.8 MiB per input block
    return vmem_limit, tile_budget


def _is_pre_v6():
    """True on chips without native bf16 VPU/EUP (v2-v5)."""
    try:
        kind = jax.devices()[0].device_kind.lower()
        return any(t in kind for t in ("v2", "v3", "v4", "v5"))
    except Exception:
        return True


def _pick_tile(lanes, bytes_per_lane, tile_budget):
    """Pick a lane tile (multiple of 128) and padded lane extent (% tile == 0)."""
    max_tile = max(128, (tile_budget // max(bytes_per_lane, 1)) // 128 * 128)
    lanes_p = _round_up(lanes, 128)
    if lanes_p <= max_tile:
        return lanes_p, lanes_p
    m = lanes_p // 128
    best = 128
    for d in range(1, m + 1):
        t = d * 128
        if m % d == 0 and t <= max_tile:
            best = t
    if 2 * best >= max_tile:            # a divisor gets us within 2x of the budget
        return best, lanes_p
    # No good divisor: pad lanes up to a multiple of the budget-optimal tile.
    return max_tile, _round_up(lanes_p, max_tile)


# --------------------------------------------------------------------------- #
# Kernels
# --------------------------------------------------------------------------- #
def _stats_kernel(x_ref, sum_ref, sq_ref):
    """Per-(sample, HW-tile) lane-wide partial sum / sum-of-squares.

    x_ref:   (1, R, T) input tile.
    sum_ref: (1, 1, R, 128) per-tile partial (no accumulation across the grid).
    sq_ref:  (1, 1, R, 128)
    Pure VALU adds; the cross-lane reduction happens once, in the XLA wrapper.
    """
    rows = x_ref.shape[1]
    n_blk = x_ref.shape[2] // 128

    def body(j, carry):
        s, q = carry
        off = pl.multiple_of(j * 128, 128)
        blk = x_ref[0, :, pl.ds(off, 128)].astype(jnp.float32)
        return s + blk, q + blk * blk

    zero = jnp.zeros((rows, 128), jnp.float32)
    s, q = lax.fori_loop(0, n_blk, body, (zero, zero), unroll=min(4, n_blk))
    sum_ref[0, 0] = s
    sq_ref[0, 0] = q


def _apply_kernel(a_ref, b_ref, x_ref, o_ref):
    """out = sigmoid(a * x + b) * x with per-row (folded BN + NAM) a, b.

    Math dtype is controlled by the dtype of a/b (bf16 on v6e/v7x bf16 inputs)."""
    x = x_ref[0]                                           # (R, T)
    z = a_ref[...] * x + b_ref[...]                        # (R,1) broadcast over lanes
    o_ref[0] = (jax.nn.sigmoid(z) * x).astype(o_ref.dtype)


def _fused_kernel(g_ref, bt_ref, x_ref, o_ref, sum_sc, sq_sc, a_sc, b_sc,
                  *, count, chunk, compute_dtype):
    """Single-read fused NAM: x and out stay resident in VMEM.

    grid = (2, n_chunks): phase 0 accumulates stats chunk by chunk (+ folds the
    per-channel scale/bias on the last chunk), phase 1 applies chunk by chunk.
    """
    p = pl.program_id(0)              # 0: stats, 1: apply
    c = pl.program_id(1)              # lane-chunk index
    off = pl.multiple_of(c * chunk, 128)

    @pl.when(jnp.logical_and(p == 0, c == 0))
    def _init():
        sum_sc[...] = jnp.zeros_like(sum_sc)
        sq_sc[...] = jnp.zeros_like(sq_sc)

    @pl.when(p == 0)
    def _stats():
        xc = x_ref[:, :, pl.ds(off, chunk)].astype(jnp.float32)   # (N, C, chunk)
        s = jnp.sum(xc, axis=2, keepdims=True)                    # (N, C, 1)
        q = jnp.sum(xc * xc, axis=2, keepdims=True)
        sum_sc[...] += jnp.sum(s, axis=0)                         # (C, 1)
        sq_sc[...] += jnp.sum(q, axis=0)

    @pl.when(jnp.logical_and(p == 0, c == pl.num_programs(1) - 1))
    def _fold():
        mean = sum_sc[...] / count
        var = jnp.maximum(sq_sc[...] / count - mean * mean, 0.0)  # clamp cancellation
        inv_std = lax.rsqrt(var + _EPS)
        g = g_ref[...]
        w = jnp.abs(g) / jnp.sum(jnp.abs(g), keepdims=True)       # NAM channel weight
        a_sc[...] = g * inv_std * w
        b_sc[...] = (bt_ref[...] - g * mean * inv_std) * w

    @pl.when(p == 1)
    def _apply():
        xc = x_ref[:, :, pl.ds(off, chunk)].astype(compute_dtype)
        a = a_sc[...].astype(compute_dtype)
        b = b_sc[...].astype(compute_dtype)
        z = a * xc + b
        o_ref[:, :, pl.ds(off, chunk)] = (jax.nn.sigmoid(z) * xc).astype(o_ref.dtype)


# --------------------------------------------------------------------------- #
# Wrappers
# --------------------------------------------------------------------------- #
def _nam_fused(x3, gamma, beta, N, C, H, W, HW, hw_p, chunk, compute_dtype,
               vmem_limit):
    dtype = x3.dtype
    if hw_p != HW:
        x3 = jnp.pad(x3, ((0, 0), (0, 0), (0, hw_p - HW)))        # zeros: stats-safe
    g = gamma.astype(jnp.float32).reshape(C, 1)
    bt = beta.astype(jnp.float32).reshape(C, 1)

    kernel = functools.partial(_fused_kernel, count=float(N * HW), chunk=chunk,
                               compute_dtype=compute_dtype)
    full_spec = pl.BlockSpec((N, C, hw_p), lambda p, c: (0, 0, 0))   # resident: 1 read / 1 write
    vec_spec = pl.BlockSpec((C, 1), lambda p, c: (0, 0))

    out3 = pl.pallas_call(
        kernel,
        out_shape=jax.ShapeDtypeStruct((N, C, hw_p), dtype),
        grid=(2, hw_p // chunk),
        in_specs=[vec_spec, vec_spec, full_spec],
        out_specs=full_spec,
        scratch_shapes=[pltpu.VMEM((C, 1), jnp.float32)] * 4,       # sum, sumsq, a, b
        compiler_params=pltpu.CompilerParams(
            dimension_semantics=("arbitrary", "arbitrary"),
            vmem_limit_bytes=vmem_limit,
        ),
    )(g, bt, x3)
    return out3[:, :, :HW].reshape(N, C, H, W)


def _nam_tiled(x3, gamma, beta, N, C, H, W, HW, itemsize, compute_dtype,
               vmem_limit, tile_budget):
    dtype = x3.dtype

    # Fold channels into full sublanes: x viewed as (N, R=C*K, L), K = 8/gcd(C,8).
    K = 8 // math.gcd(C, 8) if C % 8 else 1
    R = C * K
    r_pad8 = _round_up(R, 8)
    L = -(-HW // K)                                                 # ceil
    tile, L = _pick_tile(L, r_pad8 * max(itemsize, 4), tile_budget)
    hw_pad = K * L
    if hw_pad != HW:
        x3 = jnp.pad(x3, ((0, 0), (0, 0), (0, hw_pad - HW)))        # zeros: stats-safe
    xv = x3.reshape(N, R, L)                                        # contiguous, no transpose
    n_tiles = L // tile
    grid = (N, n_tiles)

    x_spec = pl.BlockSpec((1, R, tile), lambda n, h: (n, 0, h))
    try:   # deeper input pipelining for the DMA-bound stats pass
        x_spec_stats = pl.BlockSpec((1, R, tile), lambda n, h: (n, 0, h),
                                    pipeline_mode=pl.Buffered(3))
    except TypeError:
        x_spec_stats = x_spec
    part_spec = pl.BlockSpec((1, 1, R, 128), lambda n, h: (n, h, 0, 0))

    # ---- pass 1: per-tile lane-wide partial sums (both axes parallel) -------
    part_sum, part_sq = pl.pallas_call(
        _stats_kernel,
        out_shape=(jax.ShapeDtypeStruct((N, n_tiles, R, 128), jnp.float32),
                   jax.ShapeDtypeStruct((N, n_tiles, R, 128), jnp.float32)),
        grid=grid,
        in_specs=[x_spec_stats],
        out_specs=(part_spec, part_spec),
        compiler_params=pltpu.CompilerParams(
            dimension_semantics=("parallel", "parallel"),
            vmem_limit_bytes=vmem_limit,
        ),
        cost_estimate=pl.CostEstimate(
            flops=3 * N * R * L,
            transcendentals=0,
            bytes_accessed=N * R * L * itemsize + 2 * N * n_tiles * R * 128 * 4,
        ),
    )(xv)

    # ---- tiny per-channel math in XLA: fold BN + NAM weight into a, b -------
    count = jnp.float32(N * HW)                     # true element count (padding is zeros)
    s = jnp.sum(part_sum, axis=(0, 1, 3))           # (R,)
    ss = jnp.sum(part_sq, axis=(0, 1, 3))
    if K > 1:
        s = s.reshape(C, K).sum(axis=1)
        ss = ss.reshape(C, K).sum(axis=1)
    mean = s / count
    var = jnp.maximum(ss / count - mean * mean, 0.0)   # clamp streaming cancellation
    inv_std = lax.rsqrt(var + _EPS)

    g = gamma.astype(jnp.float32)
    bt = beta.astype(jnp.float32)
    w = jnp.abs(g) / jnp.sum(jnp.abs(g))               # NAM per-channel weight
    a_ch = g * inv_std * w
    b_ch = (bt - g * mean * inv_std) * w
    if K > 1:
        a_ch = jnp.repeat(a_ch, K)
        b_ch = jnp.repeat(b_ch, K)
    a_ch = a_ch.astype(compute_dtype).reshape(R, 1)
    b_ch = b_ch.astype(compute_dtype).reshape(R, 1)

    # ---- pass 2: element-wise apply -----------------------------------------
    vec_spec = pl.BlockSpec((R, 1), lambda n, h: (0, 0))
    out3 = pl.pallas_call(
        _apply_kernel,
        out_shape=jax.ShapeDtypeStruct((N, R, L), dtype),
        grid=grid,
        in_specs=[vec_spec, vec_spec, x_spec],
        out_specs=x_spec,
        compiler_params=pltpu.CompilerParams(
            dimension_semantics=("parallel", "parallel"),
            vmem_limit_bytes=vmem_limit,
        ),
        cost_estimate=pl.CostEstimate(
            flops=3 * N * R * L,
            transcendentals=N * R * L,
            bytes_accessed=2 * N * R * L * itemsize,
        ),
    )(a_ch, b_ch, xv)

    out3 = out3.reshape(N, C, hw_pad)
    if hw_pad != HW:
        out3 = out3[:, :, :HW]
    return out3.reshape(N, C, H, W)


def nam_forward(x_nchw, gamma, beta, *, force_two_pass=False):
    """NAM forward.  x_nchw: (N, C, H, W); gamma, beta: (C,)."""
    N, C, H, W = x_nchw.shape
    HW = H * W
    itemsize = jnp.dtype(x_nchw.dtype).itemsize
    vmem_limit, tile_budget = _budgets()

    # bf16 math for the apply path only on chips with native bf16 VPU/EUP.
    compute_dtype = (jnp.bfloat16
                     if x_nchw.dtype == jnp.bfloat16 and not _is_pre_v6()
                     else jnp.float32)

    x3 = x_nchw.reshape(N, C, HW)                   # free view, no transpose
    c_pad8 = _round_up(C, 8)

    # ---- fused single-kernel path if x (+ out + temporaries) fits VMEM ------
    hw_p = _round_up(HW, 128)
    chunk_budget = max(128, (2 * 1024 * 1024) // (N * c_pad8 * 4) // 128 * 128)
    chunk = hw_p
    if hw_p > chunk_budget:
        m = hw_p // 128
        chunk = 128
        for d in range(1, m + 1):
            t = d * 128
            if m % d == 0 and t <= chunk_budget:
                chunk = t
    resident_bytes = 2 * N * c_pad8 * hw_p * itemsize      # x + out resident in VMEM
    temp_bytes = 4 * N * c_pad8 * chunk * 4                # per-chunk f32 temporaries
    if (not force_two_pass
            and resident_bytes + temp_bytes <= (vmem_limit * 85) // 100):
        return _nam_fused(x3, gamma, beta, N, C, H, W, HW, hw_p, chunk,
                          compute_dtype, vmem_limit)

    # ---- otherwise: two tiled, auto-pipelined passes -------------------------
    return _nam_tiled(x3, gamma, beta, N, C, H, W, HW, itemsize,
                      compute_dtype, vmem_limit, tile_budget)


def nam_reference(x_nchw, gamma, beta):
    """Pure-JAX reference mirroring the PyTorch forward (training-mode BN)."""
    mean = jnp.mean(x_nchw, axis=(0, 2, 3), keepdims=True)
    var = jnp.mean((x_nchw - mean) ** 2, axis=(0, 2, 3), keepdims=True)
    g = gamma.reshape(1, -1, 1, 1)
    b = beta.reshape(1, -1, 1, 1)
    x_bn = (x_nchw - mean) * lax.rsqrt(var + _EPS) * g + b
    w = jnp.abs(gamma) / jnp.sum(jnp.abs(gamma))
    return jax.nn.sigmoid(x_bn * w.reshape(1, -1, 1, 1)) * x_nchw


if __name__ == "__main__":
    key = jax.random.PRNGKey(0)
    k_x, k_g, k_b = jax.random.split(key, 3)

    N, C, H, W = 2, 4, 16, 16
    x = jax.random.normal(k_x, (N, C, H, W), dtype=jnp.float32)
    gamma = jax.random.normal(k_g, (C,), dtype=jnp.float32)
    beta = jax.random.normal(k_b, (C,), dtype=jnp.float32)

    ref = nam_reference(x, gamma, beta)

    # Fused (VMEM-resident) path — selected automatically at this size.
    out_fused = jax.block_until_ready(nam_forward(x, gamma, beta))
    assert out_fused.shape == (N, C, H, W)
    assert jnp.allclose(out_fused, ref, atol=1e-4, rtol=1e-4), "fused path mismatch"

    # Tiled two-pass path — forced, so both code paths are compiled & checked.
    out_tiled = jax.block_until_ready(nam_forward(x, gamma, beta, force_two_pass=True))
    assert jnp.allclose(out_tiled, ref, atol=1e-4, rtol=1e-4), "tiled path mismatch"

    print("KERNEL_OK")
</pallas_src>

<mosaic_0001>
module attributes {stable_mosaic.version = 11 : i64} {
  func.func @_fused_kernel(%arg0: i32, %arg1: i32, %arg2: memref<4x1xf32, #tpu.memory_space<vmem>>, %arg3: memref<4x1xf32, #tpu.memory_space<vmem>>, %arg4: memref<2x4x256xf32, #tpu.memory_space<vmem>>, %arg5: memref<2x4x256xf32, #tpu.memory_space<vmem>>, %arg6: memref<4x1xf32, #tpu.memory_space<vmem>>, %arg7: memref<4x1xf32, #tpu.memory_space<vmem>>, %arg8: memref<4x1xf32, #tpu.memory_space<vmem>>, %arg9: memref<4x1xf32, #tpu.memory_space<vmem>>) attributes {dimension_semantics = [#tpu.dimension_semantics<arbitrary>, #tpu.dimension_semantics<arbitrary>], iteration_bounds = array<i64: 2, 1>, scalar_prefetch = 0 : i64, scratch_operands = 4 : i64, tpu.core_type = #tpu.core_type<tc>, window_params = [{pipeline_mode = #tpu.pipeline_mode<synchronous>, transform_indices = @transform_0, window_bounds = array<i64: 4, 1>}, {pipeline_mode = #tpu.pipeline_mode<synchronous>, transform_indices = @transform_1, window_bounds = array<i64: 4, 1>}, {pipeline_mode = #tpu.pipeline_mode<synchronous>, transform_indices = @transform_2, window_bounds = array<i64: 2, 4, 256>}, {pipeline_mode = #tpu.pipeline_mode<synchronous>, transform_indices = @transform_3, window_bounds = array<i64: 2, 4, 256>}]} {
    %c256_i32 = arith.constant 256 : i32
    %0 = arith.muli %arg1, %c256_i32 : i32
    %1 = tpu.assume_multiple %0, 128 : i32
    %c0_i32 = arith.constant 0 : i32
    %2 = arith.cmpi eq, %arg0, %c0_i32 : i32
    %c0_i32_0 = arith.constant 0 : i32
    %3 = arith.cmpi eq, %arg1, %c0_i32_0 : i32
    %4 = arith.andi %2, %3 : i1
    %5 = arith.extui %4 : i1 to i32
    %c0_i32_1 = arith.constant 0 : i32
    %6 = arith.cmpi ne, %5, %c0_i32_1 : i32
    scf.if %6 {
      %cst = arith.constant 0.000000e+00 : f32
      %18 = vector.broadcast %cst : f32 to vector<4x1xf32>
      %c0 = arith.constant 0 : index
      %c0_8 = arith.constant 0 : index
      %19 = vector.load %arg6[%c0, %c0_8] : memref<4x1xf32, #tpu.memory_space<vmem>>, vector<4x1xf32>
      tpu.vector_store %arg6[%c0, %c0_8], %18 {strides = array<i32>} : memref<4x1xf32, #tpu.memory_space<vmem>>, vector<4x1xf32>,
      %cst_9 = arith.constant 0.000000e+00 : f32
      %20 = vector.broadcast %cst_9 : f32 to vector<4x1xf32>
      %c0_10 = arith.constant 0 : index
      %c0_11 = arith.constant 0 : index
      %21 = vector.load %arg7[%c0_10, %c0_11] : memref<4x1xf32, #tpu.memory_space<vmem>>, vector<4x1xf32>
      tpu.vector_store %arg7[%c0_10, %c0_11], %20 {strides = array<i32>} : memref<4x1xf32, #tpu.memory_space<vmem>>, vector<4x1xf32>,
    } else {
    }
    %c0_i32_2 = arith.constant 0 : i32
    %7 = arith.cmpi eq, %arg0, %c0_i32_2 : i32
    %8 = arith.extui %7 : i1 to i32
    %c0_i32_3 = arith.constant 0 : i32
    %9 = arith.cmpi ne, %8, %c0_i32_3 : i32
    scf.if %9 {
      %c0 = arith.constant 0 : index
      %c0_8 = arith.constant 0 : index
      %18 = arith.index_cast %1 : i32 to index
      %19 = vector.load %arg4[%c0, %c0_8, %18] : memref<2x4x256xf32, #tpu.memory_space<vmem>>, vector<2x4x256xf32>
      %cst = arith.constant dense<0.000000e+00> : vector<2x4xf32>
      %20 = vector.multi_reduction <add>, %19, %cst [2] : vector<2x4x256xf32> to vector<2x4xf32>
      %21 = vector.shape_cast %20 : vector<2x4xf32> to vector<2x4x1xf32>
      %22 = arith.mulf %19, %19 : vector<2x4x256xf32>
      %cst_9 = arith.constant dense<0.000000e+00> : vector<2x4xf32>
      %23 = vector.multi_reduction <add>, %22, %cst_9 [2] : vector<2x4x256xf32> to vector<2x4xf32>
      %24 = vector.shape_cast %23 : vector<2x4xf32> to vector<2x4x1xf32>
      %c0_10 = arith.constant 0 : index
      %c0_11 = arith.constant 0 : index
      %25 = vector.load %arg6[%c0_10, %c0_11] : memref<4x1xf32, #tpu.memory_space<vmem>>, vector<4x1xf32>
      %cst_12 = arith.constant dense<0.000000e+00> : vector<4x1xf32>
      %26 = vector.multi_reduction <add>, %21, %cst_12 [0] : vector<2x4x1xf32> to vector<4x1xf32>
      %27 = arith.addf %25, %26 : vector<4x1xf32>
      %c0_13 = arith.constant 0 : index
      %c0_14 = arith.constant 0 : index
      %28 = vector.load %arg6[%c0_13, %c0_14] : memref<4x1xf32, #tpu.memory_space<vmem>>, vector<4x1xf32>
      tpu.vector_store %arg6[%c0_13, %c0_14], %27 {strides = array<i32>} : memref<4x1xf32, #tpu.memory_space<vmem>>, vector<4x1xf32>,
      %c0_15 = arith.constant 0 : index
      %c0_16 = arith.constant 0 : index
      %29 = vector.load %arg7[%c0_15, %c0_16] : memref<4x1xf32, #tpu.memory_space<vmem>>, vector<4x1xf32>
      %cst_17 = arith.constant dense<0.000000e+00> : vector<4x1xf32>
      %30 = vector.multi_reduction <add>, %24, %cst_17 [0] : vector<2x4x1xf32> to vector<4x1xf32>
      %31 = arith.addf %29, %30 : vector<4x1xf32>
      %c0_18 = arith.constant 0 : index
      %c0_19 = arith.constant 0 : index
      %32 = vector.load %arg7[%c0_18, %c0_19] : memref<4x1xf32, #tpu.memory_space<vmem>>, vector<4x1xf32>
      tpu.vector_store %arg7[%c0_18, %c0_19], %31 {strides = array<i32>} : memref<4x1xf32, #tpu.memory_space<vmem>>, vector<4x1xf32>,
    } else {
    }
    %c0_i32_4 = arith.constant 0 : i32
    %10 = arith.cmpi eq, %arg0, %c0_i32_4 : i32
    %c0_i32_5 = arith.constant 0 : i32
    %11 = arith.cmpi eq, %arg1, %c0_i32_5 : i32
    %12 = arith.andi %10, %11 : i1
    %13 = arith.extui %12 : i1 to i32
    %c0_i32_6 = arith.constant 0 : i32
    %14 = arith.cmpi ne, %13, %c0_i32_6 : i32
    scf.if %14 {
      %c0 = arith.constant 0 : index
      %c0_8 = arith.constant 0 : index
      %18 = vector.load %arg6[%c0, %c0_8] : memref<4x1xf32, #tpu.memory_space<vmem>>, vector<4x1xf32>
      %cst = arith.constant 5.120000e+02 : f32
      %19 = vector.broadcast %cst : f32 to vector<4x1xf32>
      %20 = arith.divf %18, %19 : vector<4x1xf32>
      %c0_9 = arith.constant 0 : index
      %c0_10 = arith.constant 0 : index
      %21 = vector.load %arg7[%c0_9, %c0_10] : memref<4x1xf32, #tpu.memory_space<vmem>>, vector<4x1xf32>
      %cst_11 = arith.constant 5.120000e+02 : f32
      %22 = vector.broadcast %cst_11 : f32 to vector<4x1xf32>
      %23 = arith.divf %21, %22 : vector<4x1xf32>
      %24 = arith.mulf %20, %20 : vector<4x1xf32>
      %25 = arith.subf %23, %24 : vector<4x1xf32>
      %cst_12 = arith.constant 0.000000e+00 : f32
      %26 = vector.broadcast %cst_12 : f32 to vector<4x1xf32>
      %27 = arith.maximumf %25, %26 : vector<4x1xf32>
      %cst_13 = arith.constant 9.99999974E-6 : f32
      %28 = vector.broadcast %cst_13 : f32 to vector<4x1xf32>
      %29 = arith.addf %27, %28 : vector<4x1xf32>
      %30 = math.rsqrt %29 : vector<4x1xf32>
      %c0_14 = arith.constant 0 : index
      %c0_15 = arith.constant 0 : index
      %31 = vector.load %arg2[%c0_14, %c0_15] : memref<4x1xf32, #tpu.memory_space<vmem>>, vector<4x1xf32>
      %32 = math.absf %31 : vector<4x1xf32>
      %33 = math.absf %31 : vector<4x1xf32>
      %34 = vector.shape_cast %33 : vector<4x1xf32> to vector<1x4x1xf32>
      %cst_16 = arith.constant dense<0.000000e+00> : vector<1xf32>
      %35 = vector.multi_reduction <add>, %34, %cst_16 [1, 2] : vector<1x4x1xf32> to vector<1xf32>
      %36 = vector.shape_cast %35 : vector<1xf32> to vector<1x1x1xf32>
      %37 = vector.extract %36[0, 0, 0] : f32 from vector<1x1x1xf32>
      %38 = vector.broadcast %37 : f32 to vector<1x1xf32>
      %39 = vector.broadcast %38 : vector<1x1xf32> to vector<4x1xf32>
      %40 = arith.divf %32, %39 : vector<4x1xf32>
      %41 = arith.mulf %31, %30 : vector<4x1xf32>
      %42 = arith.mulf %41, %40 : vector<4x1xf32>
      %c0_17 = arith.constant 0 : index
      %c0_18 = arith.constant 0 : index
      %43 = vector.load %arg8[%c0_17, %c0_18] : memref<4x1xf32, #tpu.memory_space<vmem>>, vector<4x1xf32>
      tpu.vector_store %arg8[%c0_17, %c0_18], %42 {strides = array<i32>} : memref<4x1xf32, #tpu.memory_space<vmem>>, vector<4x1xf32>,
      %c0_19 = arith.constant 0 : index
      %c0_20 = arith.constant 0 : index
      %44 = vector.load %arg3[%c0_19, %c0_20] : memref<4x1xf32, #tpu.memory_space<vmem>>, vector<4x1xf32>
      %45 = arith.mulf %31, %20 : vector<4x1xf32>
      %46 = arith.mulf %45, %30 : vector<4x1xf32>
      %47 = arith.subf %44, %46 : vector<4x1xf32>
      %48 = arith.mulf %47, %40 : vector<4x1xf32>
      %c0_21 = arith.constant 0 : index
      %c0_22 = arith.constant 0 : index
      %49 = vector.load %arg9[%c0_21, %c0_22] : memref<4x1xf32, #tpu.memory_space<vmem>>, vector<4x1xf32>
      tpu.vector_store %arg9[%c0_21, %c0_22], %48 {strides = array<i32>} : memref<4x1xf32, #tpu.memory_space<vmem>>, vector<4x1xf32>,
    } else {
    }
    %c1_i32 = arith.constant 1 : i32
    %15 = arith.cmpi eq, %arg0, %c1_i32 : i32
    %16 = arith.extui %15 : i1 to i32
    %c0_i32_7 = arith.constant 0 : i32
    %17 = arith.cmpi ne, %16, %c0_i32_7 : i32
    scf.if %17 {
      %c0 = arith.constant 0 : index
      %c0_8 = arith.constant 0 : index
      %18 = arith.index_cast %1 : i32 to index
      %19 = vector.load %arg4[%c0, %c0_8, %18] : memref<2x4x256xf32, #tpu.memory_space<vmem>>, vector<2x4x256xf32>
      %c0_9 = arith.constant 0 : index
      %c0_10 = arith.constant 0 : index
      %20 = vector.load %arg8[%c0_9, %c0_10] : memref<4x1xf32, #tpu.memory_space<vmem>>, vector<4x1xf32>
      %c0_11 = arith.constant 0 : index
      %c0_12 = arith.constant 0 : index
      %21 = vector.load %arg9[%c0_11, %c0_12] : memref<4x1xf32, #tpu.memory_space<vmem>>, vector<4x1xf32>
      %22 = vector.shape_cast %20 : vector<4x1xf32> to vector<1x4x1xf32>
      %23 = vector.broadcast %22 : vector<1x4x1xf32> to vector<2x4x256xf32>
      %24 = arith.mulf %23, %19 : vector<2x4x256xf32>
      %25 = vector.shape_cast %21 : vector<4x1xf32> to vector<1x4x1xf32>
      %26 = vector.broadcast %25 : vector<1x4x1xf32> to vector<2x4x256xf32>
      %27 = arith.addf %24, %26 : vector<2x4x256xf32>
      %28 = arith.negf %27 : vector<2x4x256xf32>
      %29 = math.exp %28 : vector<2x4x256xf32>
      %cst = arith.constant 1.000000e+00 : f32
      %30 = vector.broadcast %cst : f32 to vector<2x4x256xf32>
      %31 = arith.addf %30, %29 : vector<2x4x256xf32>
      %32 = arith.divf %30, %31 : vector<2x4x256xf32>
      %33 = arith.mulf %32, %19 : vector<2x4x256xf32>
      %c0_13 = arith.constant 0 : index
      %c0_14 = arith.constant 0 : index
      %34 = arith.index_cast %1 : i32 to index
      %35 = vector.load %arg5[%c0_13, %c0_14, %34] : memref<2x4x256xf32, #tpu.memory_space<vmem>>, vector<2x4x256xf32>
      tpu.vector_store %arg5[%c0_13, %c0_14, %34], %33 {strides = array<i32>} : memref<2x4x256xf32, #tpu.memory_space<vmem>>, vector<2x4x256xf32>,
    } else {
    }
    return
  }
  func.func @transform_0(%arg0: i32, %arg1: i32) -> (i32, i32) {
    %c0_i32 = arith.constant 0 : i32
    %c0_i32_0 = arith.constant 0 : i32
    %c0_i32_1 = arith.constant 0 : i32
    return %c0_i32, %c0_i32_0 : i32, i32
  }
  func.func @transform_1(%arg0: i32, %arg1: i32) -> (i32, i32) {
    %c0_i32 = arith.constant 0 : i32
    %c0_i32_0 = arith.constant 0 : i32
    %c0_i32_1 = arith.constant 0 : i32
    return %c0_i32, %c0_i32_0 : i32, i32
  }
  func.func @transform_2(%arg0: i32, %arg1: i32) -> (i32, i32, i32) {
    %c0_i32 = arith.constant 0 : i32
    %c0_i32_0 = arith.constant 0 : i32
    %c0_i32_1 = arith.constant 0 : i32
    %c0_i32_2 = arith.constant 0 : i32
    return %c0_i32, %c0_i32_0, %c0_i32_1 : i32, i32, i32
  }
  func.func @transform_3(%arg0: i32, %arg1: i32) -> (i32, i32, i32) {
    %c0_i32 = arith.constant 0 : i32
    %c0_i32_0 = arith.constant 0 : i32
    %c0_i32_1 = arith.constant 0 : i32
    %c0_i32_2 = arith.constant 0 : i32
    return %c0_i32, %c0_i32_0, %c0_i32_1 : i32, i32, i32
  }
}

</mosaic_0001>

<llo_original>
// kernel: tpu_custom_call.1
$region0: #{tpu_custom_call.1}
  #allocation0 [shape = 'u32[]', space=smem, size = 0x4, offset = 0x4, fixed_abs, tag = 'smem constant byte address 0x4 - core index']
  #allocation1 [shape = 'u32[144,128]{1,0:T(1,128)}', space=vmem, size = 0x12000, scoped, tag = 'internal scratch']
  #allocation2 [shape = 'f32[4,1]{1,0:T(4,128)}', space=vmem, size = 0x800, scoped, tag = 'scratch operand']
  #allocation3 [shape = 'f32[4,1]{1,0:T(4,128)}', space=vmem, size = 0x800, scoped, tag = 'scratch operand']
  #allocation4 [shape = 'f32[4,1]{1,0:T(4,128)}', space=vmem, size = 0x800, scoped, tag = 'scratch operand']
  #allocation5 [shape = 'f32[4,1]{1,0:T(4,128)}', space=vmem, size = 0x800, scoped, tag = 'scratch operand']
  %s0 = inlined_call_operand.hbm [shape: f32[4,1], index: 0, kind: input, shape index: {}]
  %s1 = inlined_call_operand.hbm [shape: f32[4,1], index: 1, kind: input, shape index: {}]
  %s2 = inlined_call_operand.hbm [shape: f32[2,4,256], index: 2, kind: input, shape index: {}]
  %s3 = inlined_call_operand.hbm [shape: f32[2,4,256], index: 3, kind: output, shape index: {}]
  %s4 = sld [smem:[#allocation0]]
  $region73: #{tpu_custom_call.1} parent=0
    _
  %s6 = ssub.s32 1, %s4
  %s7 = scalar_select 0, %s6, %s4
  $region1: #{tpu_custom_call.1} parent=0
    #allocation6 [shape = 'u8[2048]{0}', space=vmem, size = 0x800, scoped, tag = 'input window, operand 0, single buffered']
    #allocation7 [shape = 's32[2]{0}', space=sflag, size = 0x8, scoped, tag = 'scoped memory for tpu_custom_call.1']
    #allocation8 [shape = 's32[2]{0}', space=sflag, size = 0x8, scoped, tag = 'scoped memory for tpu_custom_call.1']
    #allocation9 [shape = 'u8[2048]{0}', space=vmem, size = 0x800, scoped, tag = 'input window, operand 1, single buffered']
    #allocation10 [shape = 's32[1]{0}', space=sflag, size = 0x4, scoped, tag = 'scoped memory for tpu_custom_call.1']
    #allocation11 [shape = 'u8[8192]{0}', space=vmem, size = 0x2000, scoped, tag = 'input window, operand 2, single buffered']
    #allocation12 [shape = 'u8[8192]{0}', space=vmem, size = 0x2000, scoped, tag = 'output window, operand 0, single buffered']
    %8 = vsyncpa [#allocation7], 0
    %9 = vsyncpa [#allocation10], 0
    %10 = vsyncpa [#allocation8], 0
    loop: start=0, step=1, limit=4
    $region2: #{tpu_custom_call.1} parent=1 // loop_pre_header
      _
    $region3: #{tpu_custom_call.1} parent=1 // loop_header
      %s12 = sphi 0, %s16
      %p13 = scmp.ge.s32.totalorder %s12, 4
      %s19 = sphi 0, %s31
      %s20 = sphi 0, %s27
      %s21 = sphi 0, %s19
      %s22 = sphi 0, %s20
      %s23 = sphi 0, %s21
      %s24 = sphi 0, %s22
      %s32 = sphi 0, %s32
      %s34 = sphi 0, %s32
      %s35 = sphi 0, %s34
      %s49 = sphi 0, %s35
      %s53 = sphi 0, %s53
      %s55 = sphi 0, %s53
      %s56 = sphi 0, %s55
      %s70 = sphi 0, %s56
      %s74 = sphi 0, %s74
      %s76 = sphi 0, %s74
      %s77 = sphi 0, %s76
      %s91 = sphi 0, %s77
      %s95 = sphi 0, %s95
      %s97 = sphi 0, %s95
      %s98 = sphi 0, %s97
      %s112 = sphi 0, %s98
    $region4: #{tpu_custom_call.1} parent=1 // loop_header_branch
      %15 = sbr.rel (%p13) target = $region8
    $region5: #{tpu_custom_call.1} parent=1 // loop_body
      %s17 = ssub.s32 %s12, 1
      %s18 = ssub.s32 %s12, 2
      %s25 = sadd.s32 1, %s20
      %p26 = scmp.ge.s32.totalorder %s25, 1
      %s27 = scalar_select %p26, 0, %s25
      %s28 = sadd.s32 1, %s19
      %s29 = scalar_select %p26, %s28, %s19
      %p30 = scmp.ge.s32.totalorder %s29, 2
      %s31 = scalar_select %p30, 0, %s29
      %s33 = sadd.s32 %s32, 1
      %p36 = scmp.eq.s32.totalorder %s12, 1
      %p37 = scmp.ne.s32.totalorder %s32, %s34
      %p38 = scmp.eq.s32.totalorder %s12, 0
      %p39 = por %p37, %p38
      %p40 = scmp.ne.s32.totalorder %s32, %s34
      %p41 = scmp.eq.s32.totalorder %s17, 1
      %p42 = por %p40, %p41
      %p43 = scmp.ne.s32.totalorder %s34, %s35
      %p44 = scmp.eq.s32.totalorder %s17, 0
      %p45 = por %p43, %p44
      %p46 = scmp.ne.s32.totalorder %s34, %s35
      %p47 = scmp.eq.s32.totalorder %s18, 1
      %p48 = por %p46, %p47
      %p50 = scmp.ne.s32.totalorder %s35, %s49
      %p51 = scmp.eq.s32.totalorder %s18, 0
      %p52 = por %p50, %p51
      %s54 = sadd.s32 %s53, 1
      %p57 = scmp.eq.s32.totalorder %s12, 1
      %p58 = scmp.ne.s32.totalorder %s53, %s55
      %p59 = scmp.eq.s32.totalorder %s12, 0
      %p60 = por %p58, %p59
      %p61 = scmp.ne.s32.totalorder %s53, %s55
      %p62 = scmp.eq.s32.totalorder %s17, 1
      %p63 = por %p61, %p62
      %p64 = scmp.ne.s32.totalorder %s55, %s56
      %p65 = scmp.eq.s32.totalorder %s17, 0
      %p66 = por %p64, %p65
      %p67 = scmp.ne.s32.totalorder %s55, %s56
      %p68 = scmp.eq.s32.totalorder %s18, 1
      %p69 = por %p67, %p68
      %p71 = scmp.ne.s32.totalorder %s56, %s70
      %p72 = scmp.eq.s32.totalorder %s18, 0
      %p73 = por %p71, %p72
      %s75 = sadd.s32 %s74, 1
      %p78 = scmp.eq.s32.totalorder %s12, 1
      %p79 = scmp.ne.s32.totalorder %s74, %s76
      %p80 = scmp.eq.s32.totalorder %s12, 0
      %p81 = por %p79, %p80
      %p82 = scmp.ne.s32.totalorder %s74, %s76
      %p83 = scmp.eq.s32.totalorder %s17, 1
      %p84 = por %p82, %p83
      %p85 = scmp.ne.s32.totalorder %s76, %s77
      %p86 = scmp.eq.s32.totalorder %s17, 0
      %p87 = por %p85, %p86
      %p88 = scmp.ne.s32.totalorder %s76, %s77
      %p89 = scmp.eq.s32.totalorder %s18, 1
      %p90 = por %p88, %p89
      %p92 = scmp.ne.s32.totalorder %s77, %s91
      %p93 = scmp.eq.s32.totalorder %s18, 0
      %p94 = por %p92, %p93
      %s96 = sadd.s32 %s95, 1
      %p99 = scmp.eq.s32.totalorder %s12, 1
      %p100 = scmp.ne.s32.totalorder %s95, %s97
      %p101 = scmp.eq.s32.totalorder %s12, 0
      %p102 = por %p100, %p101
      %p103 = scmp.ne.s32.totalorder %s95, %s97
      %p104 = scmp.eq.s32.totalorder %s17, 1
      %p105 = por %p103, %p104
      %p106 = scmp.ne.s32.totalorder %s97, %s98
      %p107 = scmp.eq.s32.totalorder %s17, 0
      %p108 = por %p106, %p107
      %p109 = scmp.ne.s32.totalorder %s97, %s98
      %p110 = scmp.eq.s32.totalorder %s18, 1
      %p111 = por %p109, %p110
      %p113 = scmp.ne.s32.totalorder %s98, %s112
      %p114 = scmp.eq.s32.totalorder %s18, 0
      %p115 = por %p113, %p114
      %p116 = scmp.le.s32.totalorder 1, %s12
      %p117 = scmp.lt.s32.totalorder %s12, 3
      %p118 = pnand %p116, %p117
      %p119 = pneg %p118
      // Predicated region
      $region9: #{tpu_custom_call.1} parent=5 // pred_check
        _
      $region10: #{tpu_custom_call.1} parent=5 // pred_check_branch
        %121 = sbr.rel (%p118) target = $region12
      $region11: #{tpu_custom_call.1} parent=5 // pred_region
        %s122 = ssub.s32 %s12, 1
        // Predicated region
        $region13: #{tpu_custom_call.1} parent=11 // pred_check
          %p123 = pneg %p45
        $region14: #{tpu_custom_call.1} parent=11 // pred_check_branch
          %125 = sbr.rel (%p123) target = $region16
        $region15: #{tpu_custom_call.1} parent=11 // pred_region
          %s127 = ssub.s32 64, 64
          %128 = vsyncadd [#allocation7], %s127
          %s130 = sshll.u32 [#allocation6], 4
          %s131 = int_to_ptr.vmem [resolvable:$true] %s130
          %133 = dma.hbm_to_vmem [thread:$0]  %s0, 64, %s131, [#allocation7]
        $region16: #{tpu_custom_call.1} parent=11 // pred_fallthru
          _
        // Predicated region
        $region17: #{tpu_custom_call.1} parent=11 // pred_check
          %p134 = pneg %p66
        $region18: #{tpu_custom_call.1} parent=11 // pred_check_branch
          %136 = sbr.rel (%p134) target = $region20
        $region19: #{tpu_custom_call.1} parent=11 // pred_region
          %s138 = ssub.s32 64, 64
          %139 = vsyncadd [#allocation10], %s138
          %s141 = sshll.u32 [#allocation9], 4
          %s142 = int_to_ptr.vmem [resolvable:$true] %s141
          %144 = dma.hbm_to_vmem [thread:$0]  %s1, 64, %s142, [#allocation10]
        $region20: #{tpu_custom_call.1} parent=11 // pred_fallthru
          _
        // Predicated region
        $region21: #{tpu_custom_call.1} parent=11 // pred_check
          %p145 = pneg %p87
        $region22: #{tpu_custom_call.1} parent=11 // pred_check_branch
          %147 = sbr.rel (%p145) target = $region24
        $region23: #{tpu_custom_call.1} parent=11 // pred_region
          %s149 = ssub.s32 256, 256
          %150 = vsyncadd [#allocation10], %s149
          %s151 = sshll.u32 [#allocation11], 4
          %s152 = int_to_ptr.vmem [resolvable:$true] %s151
          %157 = dma.hbm_to_vmem [thread:$0]  %s2, 256, %s152, [#allocation10], 128, 128, 8
        $region24: #{tpu_custom_call.1} parent=11 // pred_fallthru
          _
      $region12: #{tpu_custom_call.1} parent=5 // pred_fallthru
        _
      %p158 = scmp.lt.s32.totalorder %s12, 2
      // Predicated region
      $region25: #{tpu_custom_call.1} parent=5 // pred_check
        %p159 = pneg %p158
      $region26: #{tpu_custom_call.1} parent=5 // pred_check_branch
        %161 = sbr.rel (%p159) target = $region28
      $region27: #{tpu_custom_call.1} parent=5 // pred_region
        _
      $region28: #{tpu_custom_call.1} parent=5 // pred_fallthru
        _
      %p162 = scmp.le.s32.totalorder 1, %s12
      %p163 = scmp.lt.s32.totalorder %s12, 3
      %p164 = pnand %p162, %p163
      %p165 = pneg %p164
      // Predicated region
      $region29: #{tpu_custom_call.1} parent=5 // pred_check
        _
      $region30: #{tpu_custom_call.1} parent=5 // pred_check_branch
        %167 = sbr.rel (%p164) target = $region32
      $region31: #{tpu_custom_call.1} parent=5 // pred_region
        %s168 = ssub.s32 %s12, 1
        // Predicated region
        $region33: #{tpu_custom_call.1} parent=31 // pred_check
          %p169 = pneg %p45
        $region34: #{tpu_custom_call.1} parent=31 // pred_check_branch
          %171 = sbr.rel (%p169) target = $region36
        $region35: #{tpu_custom_call.1} parent=31 // pred_region
          %172 = dma.done [#allocation7], 64
        $region36: #{tpu_custom_call.1} parent=31 // pred_fallthru
          _
        // Predicated region
        $region37: #{tpu_custom_call.1} parent=31 // pred_check
          %p173 = pneg %p66
        $region38: #{tpu_custom_call.1} parent=31 // pred_check_branch
          %175 = sbr.rel (%p173) target = $region40
        $region39: #{tpu_custom_call.1} parent=31 // pred_region
          %176 = dma.done [#allocation10], 64
        $region40: #{tpu_custom_call.1} parent=31 // pred_fallthru
          _
        // Predicated region
        $region41: #{tpu_custom_call.1} parent=31 // pred_check
          %p177 = pneg %p87
        $region42: #{tpu_custom_call.1} parent=31 // pred_check_branch
          %179 = sbr.rel (%p177) target = $region44
        $region43: #{tpu_custom_call.1} parent=31 // pred_region
          %180 = dma.done [#allocation10], 256
        $region44: #{tpu_custom_call.1} parent=31 // pred_fallthru
          _
        %p181 = pneg %p45
        %p182 = pneg %p42
        %p183 = pneg %p66
        %p184 = pneg %p63
        %p185 = pneg %p87
        %p186 = pneg %p84
        %p187 = pneg %p108
        %p188 = pneg %p105
        %s189 = smul.u32 %s22, 256
        %p190 = scmp.eq.s32.totalorder %s21, 0
        %p191 = scmp.eq.s32.totalorder %s22, 0
        %p192 = pnand %p190, %p191
        %p193 = pneg %p192
        // Predicated region
        $region45: #{tpu_custom_call.1} parent=31 // pred_check
          _
        $region46: #{tpu_custom_call.1} parent=31 // pred_check_branch
          %195 = sbr.rel (%p192) target = $region48
        $region47: #{tpu_custom_call.1} parent=31 // pred_region
          %vm196 = vcmask 3072
          %197 = vst.msk [vmem:[#allocation2] sm:$0xf] %vm196, 0.0
          %198 = vst.msk [vmem:[#allocation3] sm:$0xf] %vm196, 0.0
        $region48: #{tpu_custom_call.1} parent=31 // pred_fallthru
          _
        // Predicated region
        $region49: #{tpu_custom_call.1} parent=31 // pred_check
          %p199 = pneg %p190
        $region50: #{tpu_custom_call.1} parent=31 // pred_check_branch
          %201 = sbr.rel (%p199) target = $region52
        $region51: #{tpu_custom_call.1} parent=31 // pred_region
          %s202 = sshra.s32 %s189, 7
          %s203 = sand.u32 %s189, 127
          %s204 = smul.addr %s202, 4
          %s205 = scalar_lea.vmem [#allocation11], %s204
          %v206 = vld [vmem:[%s205] sm:$0xff]
          %v207 = vld [vmem:[%s205 + $0x8] sm:$0xff]
          %v210 = vcombine.high %v206, %v206
          %v211 = vcombine.high %v207, %v207
          %vm214 = vcmask 1043456
          %v215 = vsel %vm214, %v206, 0.0
          %v216 = vsel %vm214, %v210, 0.0
          %v217 = vadd.f32 %v215, %v216
          %218 = vadd.xlane.f32.xlu0 %v217
          %v219 = vpop.xlane.xlu0 %218
          %v220 = vsel %vm214, %v207, 0.0
          %v221 = vsel %vm214, %v211, 0.0
          %v222 = vadd.f32 %v220, %v221
          %223 = vadd.xlane.f32.xlu0 %v222
          %v224 = vpop.xlane.xlu0 %223
          %v225 = vmul.f32 %v206, %v206
          %v226 = vmul.f32 %v207, %v207
          %v229 = vcombine.high %v225, %v225
          %v230 = vcombine.high %v226, %v226
          %v233 = vsel %vm214, %v225, 0.0
          %v234 = vsel %vm214, %v229, 0.0
          %v235 = vadd.f32 %v233, %v234
          %236 = vadd.xlane.f32.xlu0 %v235
          %v237 = vpop.xlane.xlu0 %236
          %v238 = vsel %vm214, %v226, 0.0
          %v239 = vsel %vm214, %v230, 0.0
          %v240 = vadd.f32 %v238, %v239
          %241 = vadd.xlane.f32.xlu0 %v240
          %v242 = vpop.xlane.xlu0 %241
          %v243 = vld [vmem:[#allocation2] sm:$0xf]
          %v244 = vsel %vm214, %v219, 0.0
          %v245 = vsel %vm214, %v224, 0.0
          %v246 = vadd.f32 %v244, %v245
          %v247 = vadd.f32 %v243, %v246
          %vm248 = vcmask 3072
          %249 = vst.msk [vmem:[#allocation2] sm:$0xf] %vm248, %v247
          %v250 = vld [vmem:[#allocation3] sm:$0xf]
          %v251 = vsel %vm214, %v237, 0.0
          %v252 = vsel %vm214, %v242, 0.0
          %v253 = vadd.f32 %v251, %v252
          %v254 = vadd.f32 %v250, %v253
          %255 = vst.msk [vmem:[#allocation3] sm:$0xf] %vm248, %v254
        $region52: #{tpu_custom_call.1} parent=31 // pred_fallthru
          _
        // Predicated region
        $region53: #{tpu_custom_call.1} parent=31 // pred_check
          _
        $region54: #{tpu_custom_call.1} parent=31 // pred_check_branch
          %257 = sbr.rel (%p192) target = $region56
        $region55: #{tpu_custom_call.1} parent=31 // pred_region
          %v258 = vld [vmem:[#allocation2] sm:$0xf]
          %v259 = vrcp.pop 512.0
          %v260 = vmul.f32 %v258, %v259
          %v261 = vld [vmem:[#allocation3] sm:$0xf]
          %v262 = vmul.f32 %v261, %v259
          %v263 = vmul.f32 %v260, %v260
          %v264 = vsub.f32 %v262, %v263
          %v265 = vmax.f32 %v264, 0.0
          %v266 = vadd.f32 %v265, 1e-05
          %v267 = vrsqrt.pop %v266
          %v268 = vld [vmem:[#allocation6] sm:$0xf]
          %v269 = vand.u32 2147483647, %v268
          %vm270 = vcmask 3072
          %v271 = vsel %vm270, %v269, 0.0
          %272 = vadd.xlane.f32.xlu0 %v271
          %v273 = vpop.xlane.xlu0 %272
          %v274 = vrot.slane %v273, 4
          %v275 = vadd.f32 %v273, %v274
          %v276 = vrot.slane %v275, 2
          %v277 = vadd.f32 %v275, %v276
          %v278 = vrot.slane %v277, 1
          %v279 = vadd.f32 %v277, %v278
          %s280 = vtos %v279
          %v281 = vstv %s280
          %v282 = vrcp.pop %v281
          %v283 = vmul.f32 %v269, %v282
          %v284 = vmul.f32 %v268, %v267
          %v285 = vmul.f32 %v284, %v283
          %286 = vst.msk [vmem:[#allocation4] sm:$0xf] %vm270, %v285
          %v287 = vld [vmem:[#allocation9] sm:$0xf]
          %v288 = vmul.f32 %v268, %v260
          %v289 = vmul.f32 %v288, %v267
          %v290 = vsub.f32 %v287, %v289
          %v291 = vmul.f32 %v290, %v283
          %292 = vst.msk [vmem:[#allocation5] sm:$0xf] %vm270, %v291
        $region56: #{tpu_custom_call.1} parent=31 // pred_fallthru
          _
        %p293 = scmp.eq.s32.totalorder %s21, 1
        // Predicated region
        $region57: #{tpu_custom_call.1} parent=31 // pred_check
          %p294 = pneg %p293
        $region58: #{tpu_custom_call.1} parent=31 // pred_check_branch
          %296 = sbr.rel (%p294) target = $region60
        $region59: #{tpu_custom_call.1} parent=31 // pred_region
          %s297 = sshra.s32 %s189, 7
          %s298 = sand.u32 %s189, 127
          %s299 = smul.addr %s297, 4
          %s300 = scalar_lea.vmem [#allocation11], %s299
          %v301 = vld [vmem:[%s300] sm:$0xff]
          %v302 = vld [vmem:[%s300 + $0x8] sm:$0xff]
          %v303 = vld [vmem:[#allocation4] sm:$0xf]
          %v304 = vld [vmem:[#allocation5] sm:$0xf]
          %306 = vset.pattern.permute.xlu0 0
          %307 = vperm.xlu0 %306, %v303
          %v308 = vpop.permute.xlu0 %307
          %v312 = vcombine.high %v301, %v301
          %v313 = vcombine.high %v302, %v302
          %v316 = vmul.f32 %v308, %v301
          %v317 = vmul.f32 %v308, %v312
          %v318 = vmul.f32 %v308, %v302
          %v319 = vmul.f32 %v308, %v313
          %321 = vset.pattern.permute.xlu0 0
          %322 = vperm.xlu0 %321, %v304
          %v323 = vpop.permute.xlu0 %322
          %v325 = vadd.f32 %v316, %v323
          %v326 = vadd.f32 %v317, %v323
          %v327 = vadd.f32 %v318, %v323
          %v328 = vadd.f32 %v319, %v323
          %v329 = vxor.u32 %v325, 2147483648
          %v330 = vxor.u32 %v326, 2147483648
          %v331 = vxor.u32 %v327, 2147483648
          %v332 = vxor.u32 %v328, 2147483648
          %v333 = vmul.f32 %v329, 1.442695
          %v334 = vpow.pop %v333
          %v335 = vmul.f32 %v330, 1.442695
          %v336 = vpow.pop %v335
          %v337 = vmul.f32 %v331, 1.442695
          %v338 = vpow.pop %v337
          %v339 = vmul.f32 %v332, 1.442695
          %v340 = vpow.pop %v339
          %v341 = vadd.f32 %v334, 1.0
          %v342 = vadd.f32 %v336, 1.0
          %v343 = vadd.f32 %v338, 1.0
          %v344 = vadd.f32 %v340, 1.0
          %v345 = vrcp.pop %v341
          %v346 = vmul.f32 1.0, %v345
          %v347 = vrcp.pop %v342
          %v348 = vmul.f32 1.0, %v347
          %v349 = vrcp.pop %v343
          %v350 = vmul.f32 1.0, %v349
          %v351 = vrcp.pop %v344
          %v352 = vmul.f32 1.0, %v351
          %v353 = vmul.f32 %v346, %v301
          %v354 = vmul.f32 %v348, %v312
          %v355 = vmul.f32 %v350, %v302
          %v356 = vmul.f32 %v352, %v313
          %v361 = vcombine.low %v353, %v354
          %v362 = vcombine.low %v355, %v356
          %s365 = smul.addr %s297, 4
          %s366 = scalar_lea.vmem [#allocation12], %s365
          %367 = vst [vmem:[%s366] sm:$0xff] %v361
          %368 = vst [vmem:[%s366 + $0x8] sm:$0xff] %v362
        $region60: #{tpu_custom_call.1} parent=31 // pred_fallthru
          _
        // Predicated region
        $region61: #{tpu_custom_call.1} parent=31 // pred_check
          %p369 = pneg %p105
        $region62: #{tpu_custom_call.1} parent=31 // pred_check_branch
          %371 = sbr.rel (%p369) target = $region64
        $region63: #{tpu_custom_call.1} parent=31 // pred_region
          %s373 = ssub.s32 256, 256
          %374 = vsyncadd [#allocation8], %s373
          %s375 = sshll.u32 [#allocation12], 4
          %s376 = int_to_ptr.vmem [resolvable:$true] %s375
          %381 = dma.vmem_to_hbm [thread:$0]  %s376, 256, %s3, [#allocation8], 128, 128, 8
        $region64: #{tpu_custom_call.1} parent=31 // pred_fallthru
          _
        // Predicated region
        $region65: #{tpu_custom_call.1} parent=31 // pred_check
          %p382 = pneg %p105
        $region66: #{tpu_custom_call.1} parent=31 // pred_check_branch
          %384 = sbr.rel (%p382) target = $region68
        $region67: #{tpu_custom_call.1} parent=31 // pred_region
          %385 = dma.done [#allocation8], 256
        $region68: #{tpu_custom_call.1} parent=31 // pred_fallthru
          _
      $region32: #{tpu_custom_call.1} parent=5 // pred_fallthru
        _
      %p386 = scmp.le.s32.totalorder 2, %s12
      // Predicated region
      $region69: #{tpu_custom_call.1} parent=5 // pred_check
        %p387 = pneg %p386
      $region70: #{tpu_custom_call.1} parent=5 // pred_check_branch
        %389 = sbr.rel (%p387) target = $region72
      $region71: #{tpu_custom_call.1} parent=5 // pred_region
        %s390 = ssub.s32 %s12, 2
      $region72: #{tpu_custom_call.1} parent=5 // pred_fallthru
        _
    $region6: #{tpu_custom_call.1} parent=1 // loop_footer
      %s16 = sadd.s32 1, %s12
    $region7: #{tpu_custom_call.1} parent=1 // loop_footer_branch
      %11 = sbr.rel target = $region3
    $region8: #{tpu_custom_call.1} parent=1 // loop_exit
      _
    %391 = vsyncpa [#allocation7], 1
    %s392 = scalar_lea.sflag [#allocation7], 1
    %393 = vsyncpa %s392, 1
    %394 = vsyncpa [#allocation10], 1
    %395 = vsyncpa [#allocation8], 1
    %s396 = scalar_lea.sflag [#allocation8], 1
    %397 = vsyncpa %s396, 1

</llo_original>
